<compile_context>
chip_gen: v6e
topology: v6e:2x2x1
jax: 0.10.0
libtpu: 0.0.40
codegen_flags: <defaults>
</compile_context>

<pallas_src>
import functools

import jax
import jax.numpy as jnp
from jax.experimental import pallas as pl
from jax.experimental.pallas import tpu as pltpu

# 512 lanes fill one 256x256 MXU pass (v6e/v7x) / all four 128x128 MXUs (v5e).
_LANE_CHUNK = 512


def _dnn_kernel(n_layers, cube_in_compute_dtype, *refs):
    """Fused MLP forward in a batch-on-lanes ("transposed") layout.

    refs = (x_ref, w0, b0, w1, b1, ..., w_{L-1}, b_{L-1}, out_ref)

      x_ref  : [in_dim, TILE_N]   compute dtype (bf16 or f32)
      w_i    : [out_i, in_i]      compute dtype (PyTorch Linear layout)
      b_i    : [out_i, 1]         f32
      out_ref: [out_dim, TILE_N]  f32

    Matches torch DNN.forward:
        for i < L-1:  h = tanh(W_i @ h + b_i) ** 3
        out = W_{L-1} @ h + b_{L-1}
    """
    x_ref = refs[0]
    out_ref = refs[-1]
    wbs = refs[1:-1]

    h = x_ref[...]                                   # [in_dim, TILE_N]
    for i in range(n_layers):
        w = wbs[2 * i][...]                          # [out_i, in_i]
        b = wbs[2 * i + 1][...]                      # [out_i, 1] f32
        # bf16 (or f32) operands into the MXU, f32 accumulation; f32 bias add.
        z = jnp.dot(w, h, preferred_element_type=jnp.float32) + b
        if i < n_layers - 1:
            t = jnp.tanh(z)                          # EUP, f32
            if cube_in_compute_dtype:
                tc = t.astype(w.dtype)               # one cast, then bf16 VALU cube
                h = tc * tc * tc
            else:
                h = (t * t * t).astype(w.dtype)      # f32 cube (v5e), cast for MXU
        else:
            out_ref[...] = z.astype(out_ref.dtype)   # lane-dense [out_dim, TILE_N]


def _pick_tiling(n_rows, tile_n):
    """Tile size (multiple of 512 lanes) and tile count (even when possible)."""
    chunks = pl.cdiv(n_rows, _LANE_CHUNK)
    max_chunks_per_tile = max(1, int(tile_n) // _LANE_CHUNK)
    if chunks >= 2:
        # Even tile count so v7x's two TensorCores both get grid work.
        n_tiles = max(2, 2 * pl.cdiv(chunks, 2 * max_chunks_per_tile))
    else:
        n_tiles = 1
    chunks_per_tile = pl.cdiv(chunks, n_tiles)
    return _LANE_CHUNK * chunks_per_tile, n_tiles


def _cube_in_compute_dtype_default(compute_dtype):
    """Cube tanh in the (bf16) compute dtype on chips with a bf16 VALU."""
    if jnp.result_type(compute_dtype) == jnp.float32:
        return False
    try:
        kind = jax.devices()[0].device_kind.lower()
    except Exception:
        return True
    return "v5" not in kind  # v5e has no bf16 VALU -> keep the f32 cube there


def dnn_forward_transposed(xt, weights, biases, *, tile_n=2048,
                           cube_in_compute_dtype=None):
    """Fused DNN forward on a batch-on-lanes input.

    xt:      [in_dim, N] in the compute dtype (bf16 recommended).  PINN
             training loops should keep collocation points persistently in
             this layout to skip the per-call transpose/cast prepass.
    returns: [out_dim, N] f32.
    """
    n_layers = len(weights)
    in_dim, N = xt.shape
    out_dim = weights[-1].shape[0]
    compute_dtype = xt.dtype

    if cube_in_compute_dtype is None:
        cube_in_compute_dtype = _cube_in_compute_dtype_default(compute_dtype)

    tile_n, n_tiles = _pick_tiling(N, tile_n)
    n_pad = tile_n * n_tiles
    if n_pad != N:
        # Single fused pad; padded columns are zero -> finite and discarded.
        xt = jnp.pad(xt, ((0, 0), (0, n_pad - N)))

    operands = [xt]
    in_specs = [pl.BlockSpec((in_dim, tile_n), lambda i: (0, i))]
    for w, b in zip(weights, biases):
        w_c = w.astype(compute_dtype)                # cast once, outside kernel
        b_c = b.reshape(-1, 1).astype(jnp.float32)   # [out_i, 1] column, f32
        operands += [w_c, b_c]
        # Whole-array blocks with a constant index_map: weights/biases stay
        # resident in VMEM across all grid steps.
        in_specs += [
            pl.BlockSpec(w_c.shape, lambda i: (0, 0)),
            pl.BlockSpec(b_c.shape, lambda i: (0, 0)),
        ]

    out_t = pl.pallas_call(
        functools.partial(_dnn_kernel, n_layers, bool(cube_in_compute_dtype)),
        out_shape=jax.ShapeDtypeStruct((out_dim, n_pad), jnp.float32),
        grid=(n_tiles,),
        in_specs=in_specs,
        out_specs=pl.BlockSpec((out_dim, tile_n), lambda i: (0, i)),
        compiler_params=pltpu.CompilerParams(
            dimension_semantics=("parallel",),
            # Explicit limit: safe on v5e's 16 MiB scoped default, and leaves
            # headroom on v7x's 64 MiB physical VMEM.
            vmem_limit_bytes=32 << 20,
        ),
    )(*operands)

    return out_t[:, :N]                              # [out_dim, N]


def dnn_forward(x, weights, biases, *, tile_n=2048, compute_dtype=jnp.bfloat16,
                cube_in_compute_dtype=None):
    """Torch-layout entry point.

    x:       [N, in_dim]            f32 (row-major, like the torch module)
    weights: list of [out_i, in_i]  (torch nn.Linear weight layout)
    biases:  list of [out_i]
    returns: [N, out_dim]           f32
    """
    xt = jnp.asarray(x).T.astype(compute_dtype)      # one fused transpose+cast
    out_t = dnn_forward_transposed(
        xt, weights, biases, tile_n=tile_n,
        cube_in_compute_dtype=cube_in_compute_dtype)
    return out_t.T                                   # back to [N, out_dim]


def init_params(layer_param, key):
    """torch.nn.Linear-style init: W [out, in], b [out], uniform +-1/sqrt(fan_in)."""
    weights, biases = [], []
    for i in range(len(layer_param) - 1):
        fan_in, fan_out = layer_param[i], layer_param[i + 1]
        key, kw, kb = jax.random.split(key, 3)
        bound = 1.0 / float(fan_in) ** 0.5
        w = jax.random.uniform(kw, (fan_out, fan_in), jnp.float32, -bound, bound)
        b = jax.random.uniform(kb, (fan_out,), jnp.float32, -bound, bound)
        weights.append(w)
        biases.append(b)
    return weights, biases


def dnn_reference(x, weights, biases, compute_dtype=jnp.float32,
                  cube_in_compute_dtype=False):
    """Pure-JAX reference matching torch DNN.forward.

    With compute_dtype=bf16 (and the matching cube flag) it mirrors the
    kernel's dtype policy exactly.
    """
    h = x.astype(compute_dtype)
    for i, (w, b) in enumerate(zip(weights, biases)):
        z = jnp.dot(h, w.T.astype(compute_dtype),
                    preferred_element_type=jnp.float32) + b.astype(jnp.float32)
        if i < len(weights) - 1:
            t = jnp.tanh(z)
            if cube_in_compute_dtype:
                tc = t.astype(compute_dtype)
                h = tc * tc * tc
            else:
                h = (t * t * t).astype(compute_dtype)
        else:
            h = z
    return h


if __name__ == "__main__":
    # PINN-style architecture: 2 inputs (x, t) -> 3 hidden layers of 32 -> 1 output.
    layer_param = [2, 32, 32, 32, 1]
    # 1000 collocation points -> 2 tiles of 512 columns (even tile count, so the
    # grid/tiling path and the v7x two-core split are both exercised).
    batch = 1000

    key = jax.random.PRNGKey(0)
    key, kx = jax.random.split(key)
    x = jax.random.normal(kx, (batch, layer_param[0]), jnp.float32)

    weights, biases = init_params(layer_param, key)

    cube_bf16 = _cube_in_compute_dtype_default(jnp.bfloat16)
    fwd = jax.jit(functools.partial(dnn_forward, cube_in_compute_dtype=cube_bf16))
    out = jax.block_until_ready(fwd(x, weights, biases))
    assert out.shape == (batch, layer_param[-1])

    # Reference mirroring the kernel's bf16-in / f32-accumulate / cube policy.
    ref = dnn_reference(x, weights, biases, compute_dtype=jnp.bfloat16,
                        cube_in_compute_dtype=cube_bf16)
    assert jnp.allclose(out, ref, atol=1e-2, rtol=1e-2), (
        float(jnp.max(jnp.abs(out - ref))))

    print("KERNEL_OK")
</pallas_src>

<mosaic_0001>
module attributes {stable_mosaic.version = 11 : i64} {
  func.func @_dnn_kernel(%arg0: i32, %arg1: memref<2x512xbf16, #tpu.memory_space<vmem>>, %arg2: memref<32x2xbf16, #tpu.memory_space<vmem>>, %arg3: memref<32x1xf32, #tpu.memory_space<vmem>>, %arg4: memref<32x32xbf16, #tpu.memory_space<vmem>>, %arg5: memref<32x1xf32, #tpu.memory_space<vmem>>, %arg6: memref<32x32xbf16, #tpu.memory_space<vmem>>, %arg7: memref<32x1xf32, #tpu.memory_space<vmem>>, %arg8: memref<1x32xbf16, #tpu.memory_space<vmem>>, %arg9: memref<1x1xf32, #tpu.memory_space<vmem>>, %arg10: memref<1x512xf32, #tpu.memory_space<vmem>>) attributes {dimension_semantics = [#tpu.dimension_semantics<parallel>], iteration_bounds = array<i64: 2>, scalar_prefetch = 0 : i64, scratch_operands = 0 : i64, tpu.core_type = #tpu.core_type<tc>, window_params = [{transform_indices = @transform_0, window_bounds = array<i64: 2, 512>}, {pipeline_mode = #tpu.pipeline_mode<synchronous>, transform_indices = @transform_1, window_bounds = array<i64: 32, 2>}, {pipeline_mode = #tpu.pipeline_mode<synchronous>, transform_indices = @transform_2, window_bounds = array<i64: 32, 1>}, {pipeline_mode = #tpu.pipeline_mode<synchronous>, transform_indices = @transform_3, window_bounds = array<i64: 32, 32>}, {pipeline_mode = #tpu.pipeline_mode<synchronous>, transform_indices = @transform_4, window_bounds = array<i64: 32, 1>}, {pipeline_mode = #tpu.pipeline_mode<synchronous>, transform_indices = @transform_5, window_bounds = array<i64: 32, 32>}, {pipeline_mode = #tpu.pipeline_mode<synchronous>, transform_indices = @transform_6, window_bounds = array<i64: 32, 1>}, {pipeline_mode = #tpu.pipeline_mode<synchronous>, transform_indices = @transform_7, window_bounds = array<i64: 1, 32>}, {pipeline_mode = #tpu.pipeline_mode<synchronous>, transform_indices = @transform_8, window_bounds = array<i64: 1, 1>}, {transform_indices = @transform_9, window_bounds = array<i64: 1, 512>}]} {
    %c0 = arith.constant 0 : index
    %c0_0 = arith.constant 0 : index
    %0 = vector.load %arg1[%c0, %c0_0] : memref<2x512xbf16, #tpu.memory_space<vmem>>, vector<2x512xbf16>
    %c0_1 = arith.constant 0 : index
    %c0_2 = arith.constant 0 : index
    %1 = vector.load %arg2[%c0_1, %c0_2] : memref<32x2xbf16, #tpu.memory_space<vmem>>, vector<32x2xbf16>
    %c0_3 = arith.constant 0 : index
    %c0_4 = arith.constant 0 : index
    %2 = vector.load %arg3[%c0_3, %c0_4] : memref<32x1xf32, #tpu.memory_space<vmem>>, vector<32x1xf32>
    %cst = arith.constant dense<0.000000e+00> : vector<32x512xf32>
    %3 = tpu.matmul %1, %0, %cst {dimension_numbers = #tpu.dot_dimension_numbers<[1], [0], [0], [1], [0, 0, 1, 1], [], []>} : vector<32x2xbf16>, vector<2x512xbf16>, vector<32x512xf32> -> vector<32x512xf32>
    %4 = vector.broadcast %2 : vector<32x1xf32> to vector<32x512xf32>
    %5 = arith.addf %3, %4 : vector<32x512xf32>
    %6 = math.tanh %5 : vector<32x512xf32>
    %7 = arith.truncf %6 : vector<32x512xf32> to vector<32x512xbf16>
    %8 = arith.mulf %7, %7 : vector<32x512xbf16>
    %9 = arith.mulf %8, %7 : vector<32x512xbf16>
    %c0_5 = arith.constant 0 : index
    %c0_6 = arith.constant 0 : index
    %10 = vector.load %arg4[%c0_5, %c0_6] : memref<32x32xbf16, #tpu.memory_space<vmem>>, vector<32x32xbf16>
    %c0_7 = arith.constant 0 : index
    %c0_8 = arith.constant 0 : index
    %11 = vector.load %arg5[%c0_7, %c0_8] : memref<32x1xf32, #tpu.memory_space<vmem>>, vector<32x1xf32>
    %cst_9 = arith.constant dense<0.000000e+00> : vector<32x512xf32>
    %12 = tpu.matmul %10, %9, %cst_9 {dimension_numbers = #tpu.dot_dimension_numbers<[1], [0], [0], [1], [0, 0, 1, 1], [], []>} : vector<32x32xbf16>, vector<32x512xbf16>, vector<32x512xf32> -> vector<32x512xf32>
    %13 = vector.broadcast %11 : vector<32x1xf32> to vector<32x512xf32>
    %14 = arith.addf %12, %13 : vector<32x512xf32>
    %15 = math.tanh %14 : vector<32x512xf32>
    %16 = arith.truncf %15 : vector<32x512xf32> to vector<32x512xbf16>
    %17 = arith.mulf %16, %16 : vector<32x512xbf16>
    %18 = arith.mulf %17, %16 : vector<32x512xbf16>
    %c0_10 = arith.constant 0 : index
    %c0_11 = arith.constant 0 : index
    %19 = vector.load %arg6[%c0_10, %c0_11] : memref<32x32xbf16, #tpu.memory_space<vmem>>, vector<32x32xbf16>
    %c0_12 = arith.constant 0 : index
    %c0_13 = arith.constant 0 : index
    %20 = vector.load %arg7[%c0_12, %c0_13] : memref<32x1xf32, #tpu.memory_space<vmem>>, vector<32x1xf32>
    %cst_14 = arith.constant dense<0.000000e+00> : vector<32x512xf32>
    %21 = tpu.matmul %19, %18, %cst_14 {dimension_numbers = #tpu.dot_dimension_numbers<[1], [0], [0], [1], [0, 0, 1, 1], [], []>} : vector<32x32xbf16>, vector<32x512xbf16>, vector<32x512xf32> -> vector<32x512xf32>
    %22 = vector.broadcast %20 : vector<32x1xf32> to vector<32x512xf32>
    %23 = arith.addf %21, %22 : vector<32x512xf32>
    %24 = math.tanh %23 : vector<32x512xf32>
    %25 = arith.truncf %24 : vector<32x512xf32> to vector<32x512xbf16>
    %26 = arith.mulf %25, %25 : vector<32x512xbf16>
    %27 = arith.mulf %26, %25 : vector<32x512xbf16>
    %c0_15 = arith.constant 0 : index
    %c0_16 = arith.constant 0 : index
    %28 = vector.load %arg8[%c0_15, %c0_16] : memref<1x32xbf16, #tpu.memory_space<vmem>>, vector<1x32xbf16>
    %c0_17 = arith.constant 0 : index
    %c0_18 = arith.constant 0 : index
    %29 = vector.load %arg9[%c0_17, %c0_18] : memref<1x1xf32, #tpu.memory_space<vmem>>, vector<1x1xf32>
    %cst_19 = arith.constant dense<0.000000e+00> : vector<1x512xf32>
    %30 = tpu.matmul %28, %27, %cst_19 {dimension_numbers = #tpu.dot_dimension_numbers<[1], [0], [0], [1], [0, 0, 1, 1], [], []>} : vector<1x32xbf16>, vector<32x512xbf16>, vector<1x512xf32> -> vector<1x512xf32>
    %31 = vector.broadcast %29 : vector<1x1xf32> to vector<1x512xf32>
    %32 = arith.addf %30, %31 : vector<1x512xf32>
    %c0_20 = arith.constant 0 : index
    %c0_21 = arith.constant 0 : index
    %33 = vector.load %arg10[%c0_20, %c0_21] : memref<1x512xf32, #tpu.memory_space<vmem>>, vector<1x512xf32>
    tpu.vector_store %arg10[%c0_20, %c0_21], %32 {strides = array<i32>} : memref<1x512xf32, #tpu.memory_space<vmem>>, vector<1x512xf32>,
    return
  }
  func.func @transform_0(%arg0: i32) -> (i32, i32) {
    %c0_i32 = arith.constant 0 : i32
    %c0_i32_0 = arith.constant 0 : i32
    return %c0_i32, %arg0 : i32, i32
  }
  func.func @transform_1(%arg0: i32) -> (i32, i32) {
    %c0_i32 = arith.constant 0 : i32
    %c0_i32_0 = arith.constant 0 : i32
    %c0_i32_1 = arith.constant 0 : i32
    return %c0_i32, %c0_i32_0 : i32, i32
  }
  func.func @transform_2(%arg0: i32) -> (i32, i32) {
    %c0_i32 = arith.constant 0 : i32
    %c0_i32_0 = arith.constant 0 : i32
    %c0_i32_1 = arith.constant 0 : i32
    return %c0_i32, %c0_i32_0 : i32, i32
  }
  func.func @transform_3(%arg0: i32) -> (i32, i32) {
    %c0_i32 = arith.constant 0 : i32
    %c0_i32_0 = arith.constant 0 : i32
    %c0_i32_1 = arith.constant 0 : i32
    return %c0_i32, %c0_i32_0 : i32, i32
  }
  func.func @transform_4(%arg0: i32) -> (i32, i32) {
    %c0_i32 = arith.constant 0 : i32
    %c0_i32_0 = arith.constant 0 : i32
    %c0_i32_1 = arith.constant 0 : i32
    return %c0_i32, %c0_i32_0 : i32, i32
  }
  func.func @transform_5(%arg0: i32) -> (i32, i32) {
    %c0_i32 = arith.constant 0 : i32
    %c0_i32_0 = arith.constant 0 : i32
    %c0_i32_1 = arith.constant 0 : i32
    return %c0_i32, %c0_i32_0 : i32, i32
  }
  func.func @transform_6(%arg0: i32) -> (i32, i32) {
    %c0_i32 = arith.constant 0 : i32
    %c0_i32_0 = arith.constant 0 : i32
    %c0_i32_1 = arith.constant 0 : i32
    return %c0_i32, %c0_i32_0 : i32, i32
  }
  func.func @transform_7(%arg0: i32) -> (i32, i32) {
    %c0_i32 = arith.constant 0 : i32
    %c0_i32_0 = arith.constant 0 : i32
    %c0_i32_1 = arith.constant 0 : i32
    return %c0_i32, %c0_i32_0 : i32, i32
  }
  func.func @transform_8(%arg0: i32) -> (i32, i32) {
    %c0_i32 = arith.constant 0 : i32
    %c0_i32_0 = arith.constant 0 : i32
    %c0_i32_1 = arith.constant 0 : i32
    return %c0_i32, %c0_i32_0 : i32, i32
  }
  func.func @transform_9(%arg0: i32) -> (i32, i32) {
    %c0_i32 = arith.constant 0 : i32
    %c0_i32_0 = arith.constant 0 : i32
    return %c0_i32, %arg0 : i32, i32
  }
}

</mosaic_0001>

<llo_original>
// kernel: dnn_forward.1
$region0: #{dnn_forward.1}
  #allocation0 [shape = 'u32[]', space=smem, size = 0x4, offset = 0x4, fixed_abs, tag = 'smem constant byte address 0x4 - core index']
  #allocation1 [shape = 'u32[144,128]{1,0:T(1,128)}', space=vmem, size = 0x12000, scoped, tag = 'internal scratch']
  #allocation2 [shape = 'f32[1,1]{1,0:T(1,128)S(1)}', space=vmem, size = 0x200, scoped, tag = 'scoped memory for dnn_forward.1']
  %s0 = inlined_call_operand.vmem [shape: bf16[2,1024], index: 0, kind: input, shape index: {}]
  %s1 = inlined_call_operand.vmem [shape: bf16[32,2], index: 1, kind: input, shape index: {}]
  %s2 = inlined_call_operand.vmem [shape: f32[32,1], index: 2, kind: input, shape index: {}]
  %s3 = inlined_call_operand.vmem [shape: bf16[32,32], index: 3, kind: input, shape index: {}]
  %s4 = inlined_call_operand.vmem [shape: f32[32,1], index: 4, kind: input, shape index: {}]
  %s5 = inlined_call_operand.vmem [shape: bf16[32,32], index: 5, kind: input, shape index: {}]
  %s6 = inlined_call_operand.vmem [shape: f32[32,1], index: 6, kind: input, shape index: {}]
  %s7 = inlined_call_operand.vmem [shape: bf16[1,32], index: 7, kind: input, shape index: {}]
  %s8 = inlined_call_operand.<no memory space> [shape: f32[1,1], index: 8, kind: input, shape index: {}]
  %s9 = inlined_call_operand.vmem [shape: f32[1,1024], index: 9, kind: output, shape index: {}]
  %s10 = sld [smem:[#allocation0]]
  $region69: #{dnn_forward.1} parent=0
    _
  %s12 = ssub.s32 1, %s10
  %s13 = scalar_select 0, %s12, %s10
  %v14 = vstv %s8
  %15 = vst [vmem:[#allocation2] sm:$0x1] %v14
  loop: start=0, step=1, limit=4
  $region2: #{dnn_forward.1} parent=0 // loop_pre_header
    _
  $region3: #{dnn_forward.1} parent=0 // loop_header
    %s17 = sphi 0, %s21
    %p18 = scmp.ge.s32.totalorder %s17, 4
    %s27 = sphi 0, %s29
    %s30 = sphi 0, %s27
    %s31 = sphi 0, %s30
    %s47 = sphi 0, %s31
    %s51 = sphi 0, %s51
    %s53 = sphi 0, %s51
    %s54 = sphi 0, %s53
    %s68 = sphi 0, %s54
    %s72 = sphi 0, %s72
    %s74 = sphi 0, %s72
    %s75 = sphi 0, %s74
    %s89 = sphi 0, %s75
    %s93 = sphi 0, %s93
    %s95 = sphi 0, %s93
    %s96 = sphi 0, %s95
    %s110 = sphi 0, %s96
    %s114 = sphi 0, %s114
    %s116 = sphi 0, %s114
    %s117 = sphi 0, %s116
    %s131 = sphi 0, %s117
    %s135 = sphi 0, %s135
    %s137 = sphi 0, %s135
    %s138 = sphi 0, %s137
    %s152 = sphi 0, %s138
    %s156 = sphi 0, %s156
    %s158 = sphi 0, %s156
    %s159 = sphi 0, %s158
    %s173 = sphi 0, %s159
    %s177 = sphi 0, %s177
    %s179 = sphi 0, %s177
    %s180 = sphi 0, %s179
    %s194 = sphi 0, %s180
    %s198 = sphi 0, %s198
    %s200 = sphi 0, %s198
    %s201 = sphi 0, %s200
    %s215 = sphi 0, %s201
    %s221 = sphi 0, %s223
    %s224 = sphi 0, %s221
    %s225 = sphi 0, %s224
    %s241 = sphi 0, %s225
  $region4: #{dnn_forward.1} parent=0 // loop_header_branch
    %20 = sbr.rel (%p18) target = $region8
  $region5: #{dnn_forward.1} parent=0 // loop_body
    %s22 = ssub.s32 %s17, 1
    %s23 = ssub.s32 %s17, 2
    %s24 = sadd.s32 %s17, 1
    %s25 = ssub.s32 %s17, %s24
    %p26 = scmp.eq.s32.totalorder %s25, 0
    %s28 = sadd.s32 %s27, 1
    %s29 = scalar_select %p26, %s27, %s28
    %p32 = pneg %p26
    %p33 = scmp.eq.s32.totalorder %s17, 1
    %p34 = por %p32, %p33
    %p35 = scmp.ne.s32.totalorder %s27, %s30
    %p36 = scmp.eq.s32.totalorder %s17, 0
    %p37 = por %p35, %p36
    %p38 = scmp.ne.s32.totalorder %s27, %s30
    %p39 = scmp.eq.s32.totalorder %s22, 1
    %p40 = por %p38, %p39
    %p41 = scmp.ne.s32.totalorder %s30, %s31
    %p42 = scmp.eq.s32.totalorder %s22, 0
    %p43 = por %p41, %p42
    %p44 = scmp.ne.s32.totalorder %s30, %s31
    %p45 = scmp.eq.s32.totalorder %s23, 1
    %p46 = por %p44, %p45
    %p48 = scmp.ne.s32.totalorder %s31, %s47
    %p49 = scmp.eq.s32.totalorder %s23, 0
    %p50 = por %p48, %p49
    %s52 = sadd.s32 %s51, 1
    %p55 = scmp.eq.s32.totalorder %s17, 1
    %p56 = scmp.ne.s32.totalorder %s51, %s53
    %p57 = scmp.eq.s32.totalorder %s17, 0
    %p58 = por %p56, %p57
    %p59 = scmp.ne.s32.totalorder %s51, %s53
    %p60 = scmp.eq.s32.totalorder %s22, 1
    %p61 = por %p59, %p60
    %p62 = scmp.ne.s32.totalorder %s53, %s54
    %p63 = scmp.eq.s32.totalorder %s22, 0
    %p64 = por %p62, %p63
    %p65 = scmp.ne.s32.totalorder %s53, %s54
    %p66 = scmp.eq.s32.totalorder %s23, 1
    %p67 = por %p65, %p66
    %p69 = scmp.ne.s32.totalorder %s54, %s68
    %p70 = scmp.eq.s32.totalorder %s23, 0
    %p71 = por %p69, %p70
    %s73 = sadd.s32 %s72, 1
    %p76 = scmp.eq.s32.totalorder %s17, 1
    %p77 = scmp.ne.s32.totalorder %s72, %s74
    %p78 = scmp.eq.s32.totalorder %s17, 0
    %p79 = por %p77, %p78
    %p80 = scmp.ne.s32.totalorder %s72, %s74
    %p81 = scmp.eq.s32.totalorder %s22, 1
    %p82 = por %p80, %p81
    %p83 = scmp.ne.s32.totalorder %s74, %s75
    %p84 = scmp.eq.s32.totalorder %s22, 0
    %p85 = por %p83, %p84
    %p86 = scmp.ne.s32.totalorder %s74, %s75
    %p87 = scmp.eq.s32.totalorder %s23, 1
    %p88 = por %p86, %p87
    %p90 = scmp.ne.s32.totalorder %s75, %s89
    %p91 = scmp.eq.s32.totalorder %s23, 0
    %p92 = por %p90, %p91
    %s94 = sadd.s32 %s93, 1
    %p97 = scmp.eq.s32.totalorder %s17, 1
    %p98 = scmp.ne.s32.totalorder %s93, %s95
    %p99 = scmp.eq.s32.totalorder %s17, 0
    %p100 = por %p98, %p99
    %p101 = scmp.ne.s32.totalorder %s93, %s95
    %p102 = scmp.eq.s32.totalorder %s22, 1
    %p103 = por %p101, %p102
    %p104 = scmp.ne.s32.totalorder %s95, %s96
    %p105 = scmp.eq.s32.totalorder %s22, 0
    %p106 = por %p104, %p105
    %p107 = scmp.ne.s32.totalorder %s95, %s96
    %p108 = scmp.eq.s32.totalorder %s23, 1
    %p109 = por %p107, %p108
    %p111 = scmp.ne.s32.totalorder %s96, %s110
    %p112 = scmp.eq.s32.totalorder %s23, 0
    %p113 = por %p111, %p112
    %s115 = sadd.s32 %s114, 1
    %p118 = scmp.eq.s32.totalorder %s17, 1
    %p119 = scmp.ne.s32.totalorder %s114, %s116
    %p120 = scmp.eq.s32.totalorder %s17, 0
    %p121 = por %p119, %p120
    %p122 = scmp.ne.s32.totalorder %s114, %s116
    %p123 = scmp.eq.s32.totalorder %s22, 1
    %p124 = por %p122, %p123
    %p125 = scmp.ne.s32.totalorder %s116, %s117
    %p126 = scmp.eq.s32.totalorder %s22, 0
    %p127 = por %p125, %p126
    %p128 = scmp.ne.s32.totalorder %s116, %s117
    %p129 = scmp.eq.s32.totalorder %s23, 1
    %p130 = por %p128, %p129
    %p132 = scmp.ne.s32.totalorder %s117, %s131
    %p133 = scmp.eq.s32.totalorder %s23, 0
    %p134 = por %p132, %p133
    %s136 = sadd.s32 %s135, 1
    %p139 = scmp.eq.s32.totalorder %s17, 1
    %p140 = scmp.ne.s32.totalorder %s135, %s137
    %p141 = scmp.eq.s32.totalorder %s17, 0
    %p142 = por %p140, %p141
    %p143 = scmp.ne.s32.totalorder %s135, %s137
    %p144 = scmp.eq.s32.totalorder %s22, 1
    %p145 = por %p143, %p144
    %p146 = scmp.ne.s32.totalorder %s137, %s138
    %p147 = scmp.eq.s32.totalorder %s22, 0
    %p148 = por %p146, %p147
    %p149 = scmp.ne.s32.totalorder %s137, %s138
    %p150 = scmp.eq.s32.totalorder %s23, 1
    %p151 = por %p149, %p150
    %p153 = scmp.ne.s32.totalorder %s138, %s152
    %p154 = scmp.eq.s32.totalorder %s23, 0
    %p155 = por %p153, %p154
    %s157 = sadd.s32 %s156, 1
    %p160 = scmp.eq.s32.totalorder %s17, 1
    %p161 = scmp.ne.s32.totalorder %s156, %s158
    %p162 = scmp.eq.s32.totalorder %s17, 0
    %p163 = por %p161, %p162
    %p164 = scmp.ne.s32.totalorder %s156, %s158
    %p165 = scmp.eq.s32.totalorder %s22, 1
    %p166 = por %p164, %p165
    %p167 = scmp.ne.s32.totalorder %s158, %s159
    %p168 = scmp.eq.s32.totalorder %s22, 0
    %p169 = por %p167, %p168
    %p170 = scmp.ne.s32.totalorder %s158, %s159
    %p171 = scmp.eq.s32.totalorder %s23, 1
    %p172 = por %p170, %p171
    %p174 = scmp.ne.s32.totalorder %s159, %s173
    %p175 = scmp.eq.s32.totalorder %s23, 0
    %p176 = por %p174, %p175
    %s178 = sadd.s32 %s177, 1
    %p181 = scmp.eq.s32.totalorder %s17, 1
    %p182 = scmp.ne.s32.totalorder %s177, %s179
    %p183 = scmp.eq.s32.totalorder %s17, 0
    %p184 = por %p182, %p183
    %p185 = scmp.ne.s32.totalorder %s177, %s179
    %p186 = scmp.eq.s32.totalorder %s22, 1
    %p187 = por %p185, %p186
    %p188 = scmp.ne.s32.totalorder %s179, %s180
    %p189 = scmp.eq.s32.totalorder %s22, 0
    %p190 = por %p188, %p189
    %p191 = scmp.ne.s32.totalorder %s179, %s180
    %p192 = scmp.eq.s32.totalorder %s23, 1
    %p193 = por %p191, %p192
    %p195 = scmp.ne.s32.totalorder %s180, %s194
    %p196 = scmp.eq.s32.totalorder %s23, 0
    %p197 = por %p195, %p196
    %s199 = sadd.s32 %s198, 1
    %p202 = scmp.eq.s32.totalorder %s17, 1
    %p203 = scmp.ne.s32.totalorder %s198, %s200
    %p204 = scmp.eq.s32.totalorder %s17, 0
    %p205 = por %p203, %p204
    %p206 = scmp.ne.s32.totalorder %s198, %s200
    %p207 = scmp.eq.s32.totalorder %s22, 1
    %p208 = por %p206, %p207
    %p209 = scmp.ne.s32.totalorder %s200, %s201
    %p210 = scmp.eq.s32.totalorder %s22, 0
    %p211 = por %p209, %p210
    %p212 = scmp.ne.s32.totalorder %s200, %s201
    %p213 = scmp.eq.s32.totalorder %s23, 1
    %p214 = por %p212, %p213
    %p216 = scmp.ne.s32.totalorder %s201, %s215
    %p217 = scmp.eq.s32.totalorder %s23, 0
    %p218 = por %p216, %p217
    %s219 = ssub.s32 %s17, %s24
    %p220 = scmp.eq.s32.totalorder %s219, 0
    %s222 = sadd.s32 %s221, 1
    %s223 = scalar_select %p220, %s221, %s222
    %p226 = pneg %p220
    %p227 = scmp.eq.s32.totalorder %s17, 1
    %p228 = por %p226, %p227
    %p229 = scmp.ne.s32.totalorder %s221, %s224
    %p230 = scmp.eq.s32.totalorder %s17, 0
    %p231 = por %p229, %p230
    %p232 = scmp.ne.s32.totalorder %s221, %s224
    %p233 = scmp.eq.s32.totalorder %s22, 1
    %p234 = por %p232, %p233
    %p235 = scmp.ne.s32.totalorder %s224, %s225
    %p236 = scmp.eq.s32.totalorder %s22, 0
    %p237 = por %p235, %p236
    %p238 = scmp.ne.s32.totalorder %s224, %s225
    %p239 = scmp.eq.s32.totalorder %s23, 1
    %p240 = por %p238, %p239
    %p242 = scmp.ne.s32.totalorder %s225, %s241
    %p243 = scmp.eq.s32.totalorder %s23, 0
    %p244 = por %p242, %p243
    %p245 = scmp.le.s32.totalorder 1, %s17
    %p246 = scmp.lt.s32.totalorder %s17, 3
    %p247 = pnand %p245, %p246
    %p248 = pneg %p247
    // Predicated region
    $region9: #{dnn_forward.1} parent=5 // pred_check
      _
    $region10: #{dnn_forward.1} parent=5 // pred_check_branch
      %250 = sbr.rel (%p247) target = $region12
    $region11: #{dnn_forward.1} parent=5 // pred_region
      %s251 = ssub.s32 %s17, 1
      // Predicated region
      $region13: #{dnn_forward.1} parent=11 // pred_check
        %p252 = pneg %p64
      $region14: #{dnn_forward.1} parent=11 // pred_check_branch
        %254 = sbr.rel (%p252) target = $region16
      $region15: #{dnn_forward.1} parent=11 // pred_region
        _
      $region16: #{dnn_forward.1} parent=11 // pred_fallthru
        _
      // Predicated region
      $region17: #{dnn_forward.1} parent=11 // pred_check
        %p255 = pneg %p85
      $region18: #{dnn_forward.1} parent=11 // pred_check_branch
        %257 = sbr.rel (%p255) target = $region20
      $region19: #{dnn_forward.1} parent=11 // pred_region
        _
      $region20: #{dnn_forward.1} parent=11 // pred_fallthru
        _
      // Predicated region
      $region21: #{dnn_forward.1} parent=11 // pred_check
        %p258 = pneg %p106
      $region22: #{dnn_forward.1} parent=11 // pred_check_branch
        %260 = sbr.rel (%p258) target = $region24
      $region23: #{dnn_forward.1} parent=11 // pred_region
        _
      $region24: #{dnn_forward.1} parent=11 // pred_fallthru
        _
      // Predicated region
      $region25: #{dnn_forward.1} parent=11 // pred_check
        %p261 = pneg %p127
      $region26: #{dnn_forward.1} parent=11 // pred_check_branch
        %263 = sbr.rel (%p261) target = $region28
      $region27: #{dnn_forward.1} parent=11 // pred_region
        _
      $region28: #{dnn_forward.1} parent=11 // pred_fallthru
        _
      // Predicated region
      $region29: #{dnn_forward.1} parent=11 // pred_check
        %p264 = pneg %p148
      $region30: #{dnn_forward.1} parent=11 // pred_check_branch
        %266 = sbr.rel (%p264) target = $region32
      $region31: #{dnn_forward.1} parent=11 // pred_region
        _
      $region32: #{dnn_forward.1} parent=11 // pred_fallthru
        _
      // Predicated region
      $region33: #{dnn_forward.1} parent=11 // pred_check
        %p267 = pneg %p169
      $region34: #{dnn_forward.1} parent=11 // pred_check_branch
        %269 = sbr.rel (%p267) target = $region36
      $region35: #{dnn_forward.1} parent=11 // pred_region
        _
      $region36: #{dnn_forward.1} parent=11 // pred_fallthru
        _
      // Predicated region
      $region37: #{dnn_forward.1} parent=11 // pred_check
        %p270 = pneg %p190
      $region38: #{dnn_forward.1} parent=11 // pred_check_branch
        %272 = sbr.rel (%p270) target = $region40
      $region39: #{dnn_forward.1} parent=11 // pred_region
        _
      $region40: #{dnn_forward.1} parent=11 // pred_fallthru
        _
      // Predicated region
      $region41: #{dnn_forward.1} parent=11 // pred_check
        %p273 = pneg %p211
      $region42: #{dnn_forward.1} parent=11 // pred_check_branch
        %275 = sbr.rel (%p273) target = $region44
      $region43: #{dnn_forward.1} parent=11 // pred_region
        _
      $region44: #{dnn_forward.1} parent=11 // pred_fallthru
        _
    $region12: #{dnn_forward.1} parent=5 // pred_fallthru
      _
    %p276 = scmp.lt.s32.totalorder %s17, 2
    // Predicated region
    $region45: #{dnn_forward.1} parent=5 // pred_check
      %p277 = pneg %p276
    $region46: #{dnn_forward.1} parent=5 // pred_check_branch
      %279 = sbr.rel (%p277) target = $region48
    $region47: #{dnn_forward.1} parent=5 // pred_region
      // Predicated region
      $region49: #{dnn_forward.1} parent=47 // pred_check
        %p280 = pneg %p37
      $region50: #{dnn_forward.1} parent=47 // pred_check_branch
        %282 = sbr.rel (%p280) target = $region52
      $region51: #{dnn_forward.1} parent=47 // pred_region
        %s283 = smul.u32 4, %s17
        %p284 = scmp.lt.s32.totalorder %s283, 7
        %s285 = scalar_select %p284, %s283, 7
        %s286 = scalar_lea.vmem %s0, %s285
        %s287 = smul.u32 4, %s17
      $region52: #{dnn_forward.1} parent=47 // pred_fallthru
        _
    $region48: #{dnn_forward.1} parent=5 // pred_fallthru
      _
    %p288 = scmp.le.s32.totalorder 1, %s17
    %p289 = scmp.lt.s32.totalorder %s17, 3
    %p290 = pnand %p288, %p289
    %p291 = pneg %p290
    // Predicated region
    $region53: #{dnn_forward.1} parent=5 // pred_check
      _
    $region54: #{dnn_forward.1} parent=5 // pred_check_branch
      %293 = sbr.rel (%p290) target = $region56
    $region55: #{dnn_forward.1} parent=5 // pred_region
      %s294 = ssub.s32 %s17, 1
      %s295 = smul.u32 4, %s22
      %p296 = scmp.lt.s32.totalorder %s295, 7
      %s297 = scalar_select %p296, %s295, 7
      %s298 = scalar_lea.vmem %s0, %s297
      %p299 = pneg %p43
      %p300 = pneg %p40
      %p301 = pneg %p64
      %p302 = pneg %p61
      %p303 = pneg %p85
      %p304 = pneg %p82
      %p305 = pneg %p106
      %p306 = pneg %p103
      %p307 = pneg %p127
      %p308 = pneg %p124
      %p309 = pneg %p148
      %p310 = pneg %p145
      %p311 = pneg %p169
      %p312 = pneg %p166
      %p313 = pneg %p190
      %p314 = pneg %p187
      %p315 = pneg %p211
      %p316 = pneg %p208
      %p317 = pneg %p237
      %p318 = pneg %p234
      %s319 = smul.u32 4, %s22
      %p320 = scmp.lt.s32.totalorder %s319, 7
      %s321 = scalar_select %p320, %s319, 7
      %s322 = scalar_lea.vmem %s9, %s321
      %s323 = smul.u32 4, %s22
      %p324 = scmp.lt.s32.totalorder %s323, 7
      %s325 = scalar_select %p324, %s323, 7
      %s326 = scalar_lea.vmem %s0, %s325
      %s327 = smul.u32 4, %s22
      %s328 = smul.u32 4, %s22
      %p329 = scmp.lt.s32.totalorder %s328, 7
      %s330 = scalar_select %p329, %s328, 7
      %s331 = scalar_lea.vmem %s9, %s330
      %s332 = smul.u32 4, %s22
      %v334 = vld [vmem:[%s326] sm:$0xf]
      %v335 = vld [vmem:[%s1] sm:$0xf]
      %v336 = vld [vmem:[%s1 + $0x4] sm:$0xf]
      %v337 = vld [vmem:[%s1 + $0x8] sm:$0xf]
      %v338 = vld [vmem:[%s1 + $0xc] sm:$0xf]
      %v339 = vld [vmem:[%s2] sm:$0xff]
      %v340 = vld [vmem:[%s2 + $0x8] sm:$0xff]
      %v341 = vld [vmem:[%s2 + $0x10] sm:$0xff]
      %v342 = vld [vmem:[%s2 + $0x18] sm:$0xff]
      %344 = vset.pattern.permute.xlu0 0
      %345 = vperm.xlu0 %344, %v339
      %v346 = vpop.permute.xlu0 %345
      %349 = vset.pattern.permute.xlu0 0
      %350 = vperm.xlu0 %349, %v340
      %v351 = vpop.permute.xlu0 %350
      %354 = vset.pattern.permute.xlu0 0
      %355 = vperm.xlu0 %354, %v341
      %v356 = vpop.permute.xlu0 %355
      %359 = vset.pattern.permute.xlu0 0
      %360 = vperm.xlu0 %359, %v342
      %v361 = vpop.permute.xlu0 %360
      %v367 = vunpack.c.l.b16 %v335
      %v368 = vunpack.c.l.b16 %v336
      %v369 = vunpack.c.l.b16 %v337
      %v370 = vunpack.c.l.b16 %v338
      %v371 = vpack.c.b16 %v368, %v367
      %v372 = vpack.c.b16 %v370, %v369
      %v375 = vunpack.c.l.s4 1966171168
      %v376 = vunpack.c.0.s8 %v375
      %v377 = vlaneseq
      %v378 = vshrl.u32 %v377, 7
      %v379 = vsub.s32 %v376, %v378
      %v380 = vrot.slane %v334, %v379
      %v381 = vcombine.high %v380, %v380
      %v383 = vunpack.c.l.s4 1966171168
      %v384 = vunpack.c.0.s8 %v383
      %v385 = vlaneseq
      %v386 = vshrl.u32 %v385, 7
      %v387 = vsub.s32 %v384, %v386
      %v388 = vrot.slane %v380, %v387
      %v390 = vunpack.c.l.s4 1966171168
      %v391 = vunpack.c.0.s8 %v390
      %v392 = vlaneseq
      %v393 = vshrl.u32 %v392, 7
      %v394 = vsub.s32 %v391, %v393
      %v395 = vrot.slane %v381, %v394
      %v396 = vcombine.high %v388, %v388
      %v397 = vcombine.high %v395, %v395
      %vm398 = vcmask 15360
      %v400 = vsel %vm398, %v371, 0
      %v403 = vsel %vm398, %v372, 0
      %vm405 = vcmask 1040384
      %v407 = vsel %vm405, %v388, 0
      %v410 = vsel %vm405, %v395, 0
      %v413 = vsel %vm405, %v396, 0
      %v416 = vsel %vm405, %v397, 0
      %418 = vmatprep.subr.bf16.mxu0 0
      %419 = vmatpush1.bf16.msra.mxu0 0
      %420 = vmatprep.subr.bf16.mxu0 0
      %421 = vmatpush1.bf16.msra.mxu0 0
      %422 = vmatprep.subr.bf16.mxu0 0
      %423 = vmatpush1.bf16.msra.mxu0 0
      %424 = vmatprep.subr.bf16.mxu0 0
      %425 = vmatpush1.bf16.msra.mxu0 0
      %426 = vmatprep.subr.bf16.mxu0 0
      %427 = vmatpush1.bf16.msra.mxu0 0
      %428 = vmatprep.subr.bf16.mxu0 0
      %429 = vmatpush1.bf16.msra.mxu0 0
      %430 = vmatprep.subr.bf16.mxu0 0
      %431 = vmatpush1.bf16.msra.mxu0 0
      %432 = vmatprep.subr.bf16.mxu0 %v410
      %433 = vmatpush1.bf16.msra.mxu0 %v407
      %434 = vmatprep.subr.bf16.mxu0 0
      %435 = vmatpush2.bf16.msra.mxu0 0
      %436 = vmatprep.subr.bf16.mxu0 0
      %437 = vmatpush2.bf16.msra.mxu0 0
      %438 = vmatprep.subr.bf16.mxu0 0
      %439 = vmatpush2.bf16.msra.mxu0 0
      %440 = vmatprep.subr.bf16.mxu0 0
      %441 = vmatpush2.bf16.msra.mxu0 0
      %442 = vmatprep.subr.bf16.mxu0 0
      %443 = vmatpush2.bf16.msra.mxu0 0
      %444 = vmatprep.subr.bf16.mxu0 0
      %445 = vmatpush2.bf16.msra.mxu0 0
      %446 = vmatprep.subr.bf16.mxu0 0
      %447 = vmatpush2.bf16.msra.mxu0 0
      %448 = vmatprep.subr.bf16.mxu0 0
      %449 = vmatpush2.bf16.msra.mxu0 0
      %450 = vmatprep.mubr.bf16.mxu0 0
      %451 = vmatmul.mubr.bf16.gmra.mxu0 %v400
      %v452 = vpop.f32.mrf.mxu0
      %v453 = vadd.f32 %v346, %v452
      %v454 = vpop.f32.mrf.mxu0
      %v455 = vadd.f32 %v346, %v454
      %v456 = vpop.f32.mrf.mxu0
      %v457 = vadd.f32 %v351, %v456
      %v458 = vpop.f32.mrf.mxu0
      %v459 = vadd.f32 %v351, %v458
      %460 = vmatprep.mubr.bf16.mxu0 0
      %461 = vmatmul.mubr.bf16.gmra.mxu0 %v403
      %v462 = vpop.f32.mrf.mxu0
      %v463 = vadd.f32 %v356, %v462
      %v464 = vpop.f32.mrf.mxu0
      %v465 = vadd.f32 %v356, %v464
      %v466 = vpop.f32.mrf.mxu0
      %v467 = vadd.f32 %v361, %v466
      %v468 = vpop.f32.mrf.mxu0
      %v469 = vadd.f32 %v361, %v468
      %470 = vdwg.mxu0
      %471 = vmatprep.subr.bf16.mxu0 0
      %472 = vmatpush1.bf16.msra.mxu0 0
      %473 = vmatprep.subr.bf16.mxu0 0
      %474 = vmatpush1.bf16.msra.mxu0 0
      %475 = vmatprep.subr.bf16.mxu0 0
      %476 = vmatpush1.bf16.msra.mxu0 0
      %477 = vmatprep.subr.bf16.mxu0 0
      %478 = vmatpush1.bf16.msra.mxu0 0
      %479 = vmatprep.subr.bf16.mxu0 0
      %480 = vmatpush1.bf16.msra.mxu0 0
      %481 = vmatprep.subr.bf16.mxu0 0
      %482 = vmatpush1.bf16.msra.mxu0 0
      %483 = vmatprep.subr.bf16.mxu0 0
      %484 = vmatpush1.bf16.msra.mxu0 0
      %485 = vmatprep.subr.bf16.mxu0 %v416
      %486 = vmatpush1.bf16.msra.mxu0 %v413
      %487 = vmatprep.subr.bf16.mxu0 0
      %488 = vmatpush2.bf16.msra.mxu0 0
      %489 = vmatprep.subr.bf16.mxu0 0
      %490 = vmatpush2.bf16.msra.mxu0 0
      %491 = vmatprep.subr.bf16.mxu0 0
      %492 = vmatpush2.bf16.msra.mxu0 0
      %493 = vmatprep.subr.bf16.mxu0 0
      %494 = vmatpush2.bf16.msra.mxu0 0
      %495 = vmatprep.subr.bf16.mxu0 0
      %496 = vmatpush2.bf16.msra.mxu0 0
      %497 = vmatprep.subr.bf16.mxu0 0
      %498 = vmatpush2.bf16.msra.mxu0 0
      %499 = vmatprep.subr.bf16.mxu0 0
      %500 = vmatpush2.bf16.msra.mxu0 0
      %501 = vmatprep.subr.bf16.mxu0 0
      %502 = vmatpush2.bf16.msra.mxu0 0
      %503 = vmatprep.mubr.bf16.mxu0 0
      %504 = vmatmul.mubr.bf16.gmra.mxu0 %v400
      %v505 = vpop.f32.mrf.mxu0
      %v506 = vadd.f32 %v346, %v505
      %v507 = vpop.f32.mrf.mxu0
      %v508 = vadd.f32 %v346, %v507
      %v509 = vpop.f32.mrf.mxu0
      %v510 = vadd.f32 %v351, %v509
      %v511 = vpop.f32.mrf.mxu0
      %v512 = vadd.f32 %v351, %v511
      %513 = vmatprep.mubr.bf16.mxu0 0
      %514 = vmatmul.mubr.bf16.gmra.mxu0 %v403
      %v515 = vpop.f32.mrf.mxu0
      %v516 = vadd.f32 %v356, %v515
      %v517 = vpop.f32.mrf.mxu0
      %v518 = vadd.f32 %v356, %v517
      %v519 = vpop.f32.mrf.mxu0
      %v520 = vadd.f32 %v361, %v519
      %v521 = vpop.f32.mrf.mxu0
      %v522 = vadd.f32 %v361, %v521
      %523 = vdwg.mxu0
      %v524 = vtanh.pop %v453
      %v525 = vtanh.pop %v455
      %v526 = vtanh.pop %v506
      %v527 = vtanh.pop %v508
      %v528 = vtanh.pop %v457
      %v529 = vtanh.pop %v459
      %v530 = vtanh.pop %v510
      %v531 = vtanh.pop %v512
      %v532 = vtanh.pop %v463
      %v533 = vtanh.pop %v465
      %v534 = vtanh.pop %v516
      %v535 = vtanh.pop %v518
      %v536 = vtanh.pop %v467
      %v537 = vtanh.pop %v469
      %v538 = vtanh.pop %v520
      %v539 = vtanh.pop %v522
      %v540 = vpack.c.bf16 %v528, %v524
      %v541 = vpack.c.bf16 %v529, %v525
      %v542 = vpack.c.bf16 %v530, %v526
      %v543 = vpack.c.bf16 %v531, %v527
      %v544 = vpack.c.bf16 %v536, %v532
      %v545 = vpack.c.bf16 %v537, %v533
      %v546 = vpack.c.bf16 %v538, %v534
      %v547 = vpack.c.bf16 %v539, %v535
      %v548 = vmul.bf16 %v540, %v540
      %v549 = vmul.bf16 %v541, %v541
      %v550 = vmul.bf16 %v542, %v542
      %v551 = vmul.bf16 %v543, %v543
      %v552 = vmul.bf16 %v544, %v544
      %v553 = vmul.bf16 %v545, %v545
      %v554 = vmul.bf16 %v546, %v546
      %v555 = vmul.bf16 %v547, %v547
      %v556 = vmul.bf16 %v548, %v540
      %v557 = vmul.bf16 %v549, %v541
      %v558 = vmul.bf16 %v550, %v542
      %v559 = vmul.bf16 %v551, %v543
      %v560 = vmul.bf16 %v552, %v544
      %v561 = vmul.bf16 %v553, %v545
      %v562 = vmul.bf16 %v554, %v546
      %v563 = vmul.bf16 %v555, %v547
      %v564 = vld [vmem:[%s3] sm:$0xf]
      %v565 = vld [vmem:[%s3 + $0x4] sm:$0xf]
      %v566 = vld [vmem:[%s3 + $0x8] sm:$0xf]
      %v567 = vld [vmem:[%s3 + $0xc] sm:$0xf]
      %v568 = vld [vmem:[%s4] sm:$0xff]
      %v569 = vld [vmem:[%s4 + $0x8] sm:$0xff]
      %v570 = vld [vmem:[%s4 + $0x10] sm:$0xff]
      %v571 = vld [vmem:[%s4 + $0x18] sm:$0xff]
      %573 = vset.pattern.permute.xlu0 0
      %574 = vperm.xlu0 %573, %v568
      %v575 = vpop.permute.xlu0 %574
      %578 = vset.pattern.permute.xlu0 0
      %579 = vperm.xlu0 %578, %v569
      %v580 = vpop.permute.xlu0 %579
      %583 = vset.pattern.permute.xlu0 0
      %584 = vperm.xlu0 %583, %v570
      %v585 = vpop.permute.xlu0 %584
      %588 = vset.pattern.permute.xlu0 0
      %589 = vperm.xlu0 %588, %v571
      %v590 = vpop.permute.xlu0 %589
      %v596 = vunpack.c.l.b16 %v564
      %v597 = vunpack.c.l.b16 %v565
      %v598 = vunpack.c.l.b16 %v566
      %v599 = vunpack.c.l.b16 %v567
      %v600 = vpack.c.b16 %v597, %v596
      %v601 = vpack.c.b16 %v599, %v598
      %vm602 = vcmask 261120
      %v604 = vsel %vm602, %v600, 0
      %v607 = vsel %vm602, %v601, 0
      %609 = vmatprep.subr.bf16.mxu0 0
      %610 = vmatpush1.bf16.msra.mxu0 0
      %611 = vmatprep.subr.bf16.mxu0 0
      %612 = vmatpush1.bf16.msra.mxu0 0
      %613 = vmatprep.subr.bf16.mxu0 0
      %614 = vmatpush1.bf16.msra.mxu0 0
      %615 = vmatprep.subr.bf16.mxu0 0
      %616 = vmatpush1.bf16.msra.mxu0 0
      %617 = vmatprep.subr.bf16.mxu0 0
      %618 = vmatpush1.bf16.msra.mxu0 0
      %619 = vmatprep.subr.bf16.mxu0 0
      %620 = vmatpush1.bf16.msra.mxu0 0
      %621 = vmatprep.subr.bf16.mxu0 %v561
      %622 = vmatpush1.bf16.msra.mxu0 %v560
      %623 = vmatprep.subr.bf16.mxu0 %v557
      %624 = vmatpush1.bf16.msra.mxu0 %v556
      %625 = vmatprep.subr.bf16.mxu0 0
      %626 = vmatpush2.bf16.msra.mxu0 0
      %627 = vmatprep.subr.bf16.mxu0 0
      %628 = vmatpush2.bf16.msra.mxu0 0
      %629 = vmatprep.subr.bf16.mxu0 0
      %630 = vmatpush2.bf16.msra.mxu0 0
      %631 = vmatprep.subr.bf16.mxu0 0
      %632 = vmatpush2.bf16.msra.mxu0 0
      %633 = vmatprep.subr.bf16.mxu0 0
      %634 = vmatpush2.bf16.msra.mxu0 0
      %635 = vmatprep.subr.bf16.mxu0 0
      %636 = vmatpush2.bf16.msra.mxu0 0
      %637 = vmatprep.subr.bf16.mxu0 0
      %638 = vmatpush2.bf16.msra.mxu0 0
      %639 = vmatprep.subr.bf16.mxu0 0
      %640 = vmatpush2.bf16.msra.mxu0 0
      %641 = vmatprep.mubr.bf16.mxu0 0
      %642 = vmatmul.mubr.bf16.gmra.mxu0 %v604
      %v643 = vpop.f32.mrf.mxu0
      %v644 = vadd.f32 %v575, %v643
      %v645 = vpop.f32.mrf.mxu0
      %v646 = vadd.f32 %v575, %v645
      %v647 = vpop.f32.mrf.mxu0
      %v648 = vadd.f32 %v580, %v647
      %v649 = vpop.f32.mrf.mxu0
      %v650 = vadd.f32 %v580, %v649
      %651 = vmatprep.mubr.bf16.mxu0 0
      %652 = vmatmul.mubr.bf16.gmra.mxu0 %v607
      %v653 = vpop.f32.mrf.mxu0
      %v654 = vadd.f32 %v585, %v653
      %v655 = vpop.f32.mrf.mxu0
      %v656 = vadd.f32 %v585, %v655
      %v657 = vpop.f32.mrf.mxu0
      %v658 = vadd.f32 %v590, %v657
      %v659 = vpop.f32.mrf.mxu0
      %v660 = vadd.f32 %v590, %v659
      %661 = vdwg.mxu0
      %662 = vmatprep.subr.bf16.mxu0 0
      %663 = vmatpush1.bf16.msra.mxu0 0
      %664 = vmatprep.subr.bf16.mxu0 0
      %665 = vmatpush1.bf16.msra.mxu0 0
      %666 = vmatprep.subr.bf16.mxu0 0
      %667 = vmatpush1.bf16.msra.mxu0 0
      %668 = vmatprep.subr.bf16.mxu0 0
      %669 = vmatpush1.bf16.msra.mxu0 0
      %670 = vmatprep.subr.bf16.mxu0 0
      %671 = vmatpush1.bf16.msra.mxu0 0
      %672 = vmatprep.subr.bf16.mxu0 0
      %673 = vmatpush1.bf16.msra.mxu0 0
      %674 = vmatprep.subr.bf16.mxu0 %v563
      %675 = vmatpush1.bf16.msra.mxu0 %v562
      %676 = vmatprep.subr.bf16.mxu0 %v559
      %677 = vmatpush1.bf16.msra.mxu0 %v558
      %678 = vmatprep.subr.bf16.mxu0 0
      %679 = vmatpush2.bf16.msra.mxu0 0
      %680 = vmatprep.subr.bf16.mxu0 0
      %681 = vmatpush2.bf16.msra.mxu0 0
      %682 = vmatprep.subr.bf16.mxu0 0
      %683 = vmatpush2.bf16.msra.mxu0 0
      %684 = vmatprep.subr.bf16.mxu0 0
      %685 = vmatpush2.bf16.msra.mxu0 0
      %686 = vmatprep.subr.bf16.mxu0 0
      %687 = vmatpush2.bf16.msra.mxu0 0
      %688 = vmatprep.subr.bf16.mxu0 0
      %689 = vmatpush2.bf16.msra.mxu0 0
      %690 = vmatprep.subr.bf16.mxu0 0
      %691 = vmatpush2.bf16.msra.mxu0 0
      %692 = vmatprep.subr.bf16.mxu0 0
      %693 = vmatpush2.bf16.msra.mxu0 0
      %694 = vmatprep.mubr.bf16.mxu0 0
      %695 = vmatmul.mubr.bf16.gmra.mxu0 %v604
      %v696 = vpop.f32.mrf.mxu0
      %v697 = vadd.f32 %v575, %v696
      %v698 = vpop.f32.mrf.mxu0
      %v699 = vadd.f32 %v575, %v698
      %v700 = vpop.f32.mrf.mxu0
      %v701 = vadd.f32 %v580, %v700
      %v702 = vpop.f32.mrf.mxu0
      %v703 = vadd.f32 %v580, %v702
      %704 = vmatprep.mubr.bf16.mxu0 0
      %705 = vmatmul.mubr.bf16.gmra.mxu0 %v607
      %v706 = vpop.f32.mrf.mxu0
      %v707 = vadd.f32 %v585, %v706
      %v708 = vpop.f32.mrf.mxu0
      %v709 = vadd.f32 %v585, %v708
      %v710 = vpop.f32.mrf.mxu0
      %v711 = vadd.f32 %v590, %v710
      %v712 = vpop.f32.mrf.mxu0
      %v713 = vadd.f32 %v590, %v712
      %714 = vdwg.mxu0
      %v715 = vtanh.pop %v644
      %v716 = vtanh.pop %v646
      %v717 = vtanh.pop %v697
      %v718 = vtanh.pop %v699
      %v719 = vtanh.pop %v648
      %v720 = vtanh.pop %v650
      %v721 = vtanh.pop %v701
      %v722 = vtanh.pop %v703
      %v723 = vtanh.pop %v654
      %v724 = vtanh.pop %v656
      %v725 = vtanh.pop %v707
      %v726 = vtanh.pop %v709
      %v727 = vtanh.pop %v658
      %v728 = vtanh.pop %v660
      %v729 = vtanh.pop %v711
      %v730 = vtanh.pop %v713
      %v731 = vpack.c.bf16 %v719, %v715
      %v732 = vpack.c.bf16 %v720, %v716
      %v733 = vpack.c.bf16 %v721, %v717
      %v734 = vpack.c.bf16 %v722, %v718
      %v735 = vpack.c.bf16 %v727, %v723
      %v736 = vpack.c.bf16 %v728, %v724
      %v737 = vpack.c.bf16 %v729, %v725
      %v738 = vpack.c.bf16 %v730, %v726
      %v739 = vmul.bf16 %v731, %v731
      %v740 = vmul.bf16 %v732, %v732
      %v741 = vmul.bf16 %v733, %v733
      %v742 = vmul.bf16 %v734, %v734
      %v743 = vmul.bf16 %v735, %v735
      %v744 = vmul.bf16 %v736, %v736
      %v745 = vmul.bf16 %v737, %v737
      %v746 = vmul.bf16 %v738, %v738
      %v747 = vmul.bf16 %v739, %v731
      %v748 = vmul.bf16 %v740, %v732
      %v749 = vmul.bf16 %v741, %v733
      %v750 = vmul.bf16 %v742, %v734
      %v751 = vmul.bf16 %v743, %v735
      %v752 = vmul.bf16 %v744, %v736
      %v753 = vmul.bf16 %v745, %v737
      %v754 = vmul.bf16 %v746, %v738
      %v755 = vld [vmem:[%s5] sm:$0xf]
      %v756 = vld [vmem:[%s5 + $0x4] sm:$0xf]
      %v757 = vld [vmem:[%s5 + $0x8] sm:$0xf]
      %v758 = vld [vmem:[%s5 + $0xc] sm:$0xf]
      %v759 = vld [vmem:[%s6] sm:$0xff]
      %v760 = vld [vmem:[%s6 + $0x8] sm:$0xff]
      %v761 = vld [vmem:[%s6 + $0x10] sm:$0xff]
      %v762 = vld [vmem:[%s6 + $0x18] sm:$0xff]
      %764 = vset.pattern.permute.xlu0 0
      %765 = vperm.xlu0 %764, %v759
      %v766 = vpop.permute.xlu0 %765
      %769 = vset.pattern.permute.xlu0 0
      %770 = vperm.xlu0 %769, %v760
      %v771 = vpop.permute.xlu0 %770
      %774 = vset.pattern.permute.xlu0 0
      %775 = vperm.xlu0 %774, %v761
      %v776 = vpop.permute.xlu0 %775
      %779 = vset.pattern.permute.xlu0 0
      %780 = vperm.xlu0 %779, %v762
      %v781 = vpop.permute.xlu0 %780
      %v787 = vunpack.c.l.b16 %v755
      %v788 = vunpack.c.l.b16 %v756
      %v789 = vunpack.c.l.b16 %v757
      %v790 = vunpack.c.l.b16 %v758
      %v791 = vpack.c.b16 %v788, %v787
      %v792 = vpack.c.b16 %v790, %v789
      %v794 = vsel %vm602, %v791, 0
      %v797 = vsel %vm602, %v792, 0
      %799 = vmatprep.subr.bf16.mxu0 0
      %800 = vmatpush1.bf16.msra.mxu0 0
      %801 = vmatprep.subr.bf16.mxu0 0
      %802 = vmatpush1.bf16.msra.mxu0 0
      %803 = vmatprep.subr.bf16.mxu0 0
      %804 = vmatpush1.bf16.msra.mxu0 0
      %805 = vmatprep.subr.bf16.mxu0 0
      %806 = vmatpush1.bf16.msra.mxu0 0
      %807 = vmatprep.subr.bf16.mxu0 0
      %808 = vmatpush1.bf16.msra.mxu0 0
      %809 = vmatprep.subr.bf16.mxu0 0
      %810 = vmatpush1.bf16.msra.mxu0 0
      %811 = vmatprep.subr.bf16.mxu0 %v752
      %812 = vmatpush1.bf16.msra.mxu0 %v751
      %813 = vmatprep.subr.bf16.mxu0 %v748
      %814 = vmatpush1.bf16.msra.mxu0 %v747
      %815 = vmatprep.subr.bf16.mxu0 0
      %816 = vmatpush2.bf16.msra.mxu0 0
      %817 = vmatprep.subr.bf16.mxu0 0
      %818 = vmatpush2.bf16.msra.mxu0 0
      %819 = vmatprep.subr.bf16.mxu0 0
      %820 = vmatpush2.bf16.msra.mxu0 0
      %821 = vmatprep.subr.bf16.mxu0 0
      %822 = vmatpush2.bf16.msra.mxu0 0
      %823 = vmatprep.subr.bf16.mxu0 0
      %824 = vmatpush2.bf16.msra.mxu0 0
      %825 = vmatprep.subr.bf16.mxu0 0
      %826 = vmatpush2.bf16.msra.mxu0 0
      %827 = vmatprep.subr.bf16.mxu0 0
      %828 = vmatpush2.bf16.msra.mxu0 0
      %829 = vmatprep.subr.bf16.mxu0 0
      %830 = vmatpush2.bf16.msra.mxu0 0
      %831 = vmatprep.mubr.bf16.mxu0 0
      %832 = vmatmul.mubr.bf16.gmra.mxu0 %v794
      %v833 = vpop.f32.mrf.mxu0
      %v834 = vadd.f32 %v766, %v833
      %v835 = vpop.f32.mrf.mxu0
      %v836 = vadd.f32 %v766, %v835
      %v837 = vpop.f32.mrf.mxu0
      %v838 = vadd.f32 %v771, %v837
      %v839 = vpop.f32.mrf.mxu0
      %v840 = vadd.f32 %v771, %v839
      %841 = vmatprep.mubr.bf16.mxu0 0
      %842 = vmatmul.mubr.bf16.gmra.mxu0 %v797
      %v843 = vpop.f32.mrf.mxu0
      %v844 = vadd.f32 %v776, %v843
      %v845 = vpop.f32.mrf.mxu0
      %v846 = vadd.f32 %v776, %v845
      %v847 = vpop.f32.mrf.mxu0
      %v848 = vadd.f32 %v781, %v847
      %v849 = vpop.f32.mrf.mxu0
      %v850 = vadd.f32 %v781, %v849
      %851 = vdwg.mxu0
      %852 = vmatprep.subr.bf16.mxu0 0
      %853 = vmatpush1.bf16.msra.mxu0 0
      %854 = vmatprep.subr.bf16.mxu0 0
      %855 = vmatpush1.bf16.msra.mxu0 0
      %856 = vmatprep.subr.bf16.mxu0 0
      %857 = vmatpush1.bf16.msra.mxu0 0
      %858 = vmatprep.subr.bf16.mxu0 0
      %859 = vmatpush1.bf16.msra.mxu0 0
      %860 = vmatprep.subr.bf16.mxu0 0
      %861 = vmatpush1.bf16.msra.mxu0 0
      %862 = vmatprep.subr.bf16.mxu0 0
      %863 = vmatpush1.bf16.msra.mxu0 0
      %864 = vmatprep.subr.bf16.mxu0 %v754
      %865 = vmatpush1.bf16.msra.mxu0 %v753
      %866 = vmatprep.subr.bf16.mxu0 %v750
      %867 = vmatpush1.bf16.msra.mxu0 %v749
      %868 = vmatprep.subr.bf16.mxu0 0
      %869 = vmatpush2.bf16.msra.mxu0 0
      %870 = vmatprep.subr.bf16.mxu0 0
      %871 = vmatpush2.bf16.msra.mxu0 0
      %872 = vmatprep.subr.bf16.mxu0 0
      %873 = vmatpush2.bf16.msra.mxu0 0
      %874 = vmatprep.subr.bf16.mxu0 0
      %875 = vmatpush2.bf16.msra.mxu0 0
      %876 = vmatprep.subr.bf16.mxu0 0
      %877 = vmatpush2.bf16.msra.mxu0 0
      %878 = vmatprep.subr.bf16.mxu0 0
      %879 = vmatpush2.bf16.msra.mxu0 0
      %880 = vmatprep.subr.bf16.mxu0 0
      %881 = vmatpush2.bf16.msra.mxu0 0
      %882 = vmatprep.subr.bf16.mxu0 0
      %883 = vmatpush2.bf16.msra.mxu0 0
      %884 = vmatprep.mubr.bf16.mxu0 0
      %885 = vmatmul.mubr.bf16.gmra.mxu0 %v794
      %v886 = vpop.f32.mrf.mxu0
      %v887 = vadd.f32 %v766, %v886
      %v888 = vpop.f32.mrf.mxu0
      %v889 = vadd.f32 %v766, %v888
      %v890 = vpop.f32.mrf.mxu0
      %v891 = vadd.f32 %v771, %v890
      %v892 = vpop.f32.mrf.mxu0
      %v893 = vadd.f32 %v771, %v892
      %894 = vmatprep.mubr.bf16.mxu0 0
      %895 = vmatmul.mubr.bf16.gmra.mxu0 %v797
      %v896 = vpop.f32.mrf.mxu0
      %v897 = vadd.f32 %v776, %v896
      %v898 = vpop.f32.mrf.mxu0
      %v899 = vadd.f32 %v776, %v898
      %v900 = vpop.f32.mrf.mxu0
      %v901 = vadd.f32 %v781, %v900
      %v902 = vpop.f32.mrf.mxu0
      %v903 = vadd.f32 %v781, %v902
      %904 = vdwg.mxu0
      %v905 = vtanh.pop %v834
      %v906 = vtanh.pop %v836
      %v907 = vtanh.pop %v887
      %v908 = vtanh.pop %v889
      %v909 = vtanh.pop %v838
      %v910 = vtanh.pop %v840
      %v911 = vtanh.pop %v891
      %v912 = vtanh.pop %v893
      %v913 = vtanh.pop %v844
      %v914 = vtanh.pop %v846
      %v915 = vtanh.pop %v897
      %v916 = vtanh.pop %v899
      %v917 = vtanh.pop %v848
      %v918 = vtanh.pop %v850
      %v919 = vtanh.pop %v901
      %v920 = vtanh.pop %v903
      %v921 = vpack.c.bf16 %v909, %v905
      %v922 = vpack.c.bf16 %v910, %v906
      %v923 = vpack.c.bf16 %v911, %v907
      %v924 = vpack.c.bf16 %v912, %v908
      %v925 = vpack.c.bf16 %v917, %v913
      %v926 = vpack.c.bf16 %v918, %v914
      %v927 = vpack.c.bf16 %v919, %v915
      %v928 = vpack.c.bf16 %v920, %v916
      %v929 = vmul.bf16 %v921, %v921
      %v930 = vmul.bf16 %v922, %v922
      %v931 = vmul.bf16 %v923, %v923
      %v932 = vmul.bf16 %v924, %v924
      %v933 = vmul.bf16 %v925, %v925
      %v934 = vmul.bf16 %v926, %v926
      %v935 = vmul.bf16 %v927, %v927
      %v936 = vmul.bf16 %v928, %v928
      %v937 = vmul.bf16 %v929, %v921
      %v938 = vmul.bf16 %v930, %v922
      %v939 = vmul.bf16 %v931, %v923
      %v940 = vmul.bf16 %v932, %v924
      %v941 = vmul.bf16 %v933, %v925
      %v942 = vmul.bf16 %v934, %v926
      %v943 = vmul.bf16 %v935, %v927
      %v944 = vmul.bf16 %v936, %v928
      %v945 = vld [vmem:[%s7] sm:$0x1]
      %v946 = vld [vmem:[#allocation2] sm:$0x1]
      %948 = vset.pattern.permute.xlu0 0
      %949 = vperm.xlu0 %948, %v946
      %v950 = vpop.permute.xlu0 %949
      %v952 = vlaneseq
      %v953 = vshrl.u32 %v952, 7
      %v954 = vsub.s32 0, %v953
      %v955 = vrot.slane %v950, %v954
      %v957 = vsel %vm602, %v945, 0
      %959 = vmatprep.subr.bf16.mxu0 0
      %960 = vmatpush1.bf16.msra.mxu0 0
      %961 = vmatprep.subr.bf16.mxu0 0
      %962 = vmatpush1.bf16.msra.mxu0 0
      %963 = vmatprep.subr.bf16.mxu0 0
      %964 = vmatpush1.bf16.msra.mxu0 0
      %965 = vmatprep.subr.bf16.mxu0 0
      %966 = vmatpush1.bf16.msra.mxu0 0
      %967 = vmatprep.subr.bf16.mxu0 0
      %968 = vmatpush1.bf16.msra.mxu0 0
      %969 = vmatprep.subr.bf16.mxu0 0
      %970 = vmatpush1.bf16.msra.mxu0 0
      %971 = vmatprep.subr.bf16.mxu0 %v942
      %972 = vmatpush1.bf16.msra.mxu0 %v941
      %973 = vmatprep.subr.bf16.mxu0 %v938
      %974 = vmatpush1.bf16.msra.mxu0 %v937
      %975 = vmatprep.subr.bf16.mxu0 0
      %976 = vmatpush2.bf16.msra.mxu0 0
      %977 = vmatprep.subr.bf16.mxu0 0
      %978 = vmatpush2.bf16.msra.mxu0 0
      %979 = vmatprep.subr.bf16.mxu0 0
      %980 = vmatpush2.bf16.msra.mxu0 0
      %981 = vmatprep.subr.bf16.mxu0 0
      %982 = vmatpush2.bf16.msra.mxu0 0
      %983 = vmatprep.subr.bf16.mxu0 0
      %984 = vmatpush2.bf16.msra.mxu0 0
      %985 = vmatprep.subr.bf16.mxu0 0
      %986 = vmatpush2.bf16.msra.mxu0 0
      %987 = vmatprep.subr.bf16.mxu0 0
      %988 = vmatpush2.bf16.msra.mxu0 0
      %989 = vmatprep.subr.bf16.mxu0 0
      %990 = vmatpush2.bf16.msra.mxu0 0
      %991 = vmatprep.mubr.bf16.mxu0 0
      %992 = vmatmul.mubr.bf16.gmra.mxu0 %v957
      %v993 = vpop.f32.mrf.mxu0
      %v994 = vadd.f32 %v955, %v993
      %v995 = vpop.f32.mrf.mxu0
      %v996 = vadd.f32 %v955, %v995
      %v997 = vpop.f32.mrf.mxu0
      %v998 = vpop.f32.mrf.mxu0
      %999 = vdwg.mxu0
      %1000 = vmatprep.subr.bf16.mxu0 0
      %1001 = vmatpush1.bf16.msra.mxu0 0
      %1002 = vmatprep.subr.bf16.mxu0 0
      %1003 = vmatpush1.bf16.msra.mxu0 0
      %1004 = vmatprep.subr.bf16.mxu0 0
      %1005 = vmatpush1.bf16.msra.mxu0 0
      %1006 = vmatprep.subr.bf16.mxu0 0
      %1007 = vmatpush1.bf16.msra.mxu0 0
      %1008 = vmatprep.subr.bf16.mxu0 0
      %1009 = vmatpush1.bf16.msra.mxu0 0
      %1010 = vmatprep.subr.bf16.mxu0 0
      %1011 = vmatpush1.bf16.msra.mxu0 0
      %1012 = vmatprep.subr.bf16.mxu0 %v944
      %1013 = vmatpush1.bf16.msra.mxu0 %v943
      %1014 = vmatprep.subr.bf16.mxu0 %v940
      %1015 = vmatpush1.bf16.msra.mxu0 %v939
      %1016 = vmatprep.subr.bf16.mxu0 0
      %1017 = vmatpush2.bf16.msra.mxu0 0
      %1018 = vmatprep.subr.bf16.mxu0 0
      %1019 = vmatpush2.bf16.msra.mxu0 0
      %1020 = vmatprep.subr.bf16.mxu0 0
      %1021 = vmatpush2.bf16.msra.mxu0 0
      %1022 = vmatprep.subr.bf16.mxu0 0
      %1023 = vmatpush2.bf16.msra.mxu0 0
      %1024 = vmatprep.subr.bf16.mxu0 0
      %1025 = vmatpush2.bf16.msra.mxu0 0
      %1026 = vmatprep.subr.bf16.mxu0 0
      %1027 = vmatpush2.bf16.msra.mxu0 0
      %1028 = vmatprep.subr.bf16.mxu0 0
      %1029 = vmatpush2.bf16.msra.mxu0 0
      %1030 = vmatprep.subr.bf16.mxu0 0
      %1031 = vmatpush2.bf16.msra.mxu0 0
      %1032 = vmatprep.mubr.bf16.mxu0 0
      %1033 = vmatmul.mubr.bf16.gmra.mxu0 %v957
      %v1034 = vpop.f32.mrf.mxu0
      %v1035 = vadd.f32 %v955, %v1034
      %v1036 = vpop.f32.mrf.mxu0
      %v1037 = vadd.f32 %v955, %v1036
      %v1038 = vpop.f32.mrf.mxu0
      %v1039 = vpop.f32.mrf.mxu0
      %1040 = vdwg.mxu0
      %v1045 = vcombine.low %v994, %v996
      %v1046 = vcombine.low %v1035, %v1037
      %v1048 = vunpack.c.l.s4 1966171168
      %v1049 = vunpack.c.0.s8 %v1048
      %v1050 = vlaneseq
      %v1051 = vshrl.u32 %v1050, 7
      %v1052 = vsub.s32 %v1049, %v1051
      %v1053 = vrot.slane %v1045, %v1052
      %v1055 = vunpack.c.l.s4 1966171168
      %v1056 = vunpack.c.0.s8 %v1055
      %v1057 = vlaneseq
      %v1058 = vshrl.u32 %v1057, 7
      %v1059 = vsub.s32 %v1056, %v1058
      %v1060 = vrot.slane %v1046, %v1059
      %v1061 = vcombine.low %v1053, %v1060
      %v1063 = vunpack.c.l.s4 1966171168
      %v1064 = vunpack.c.0.s8 %v1063
      %v1065 = vlaneseq
      %v1066 = vshrl.u32 %v1065, 7
      %v1067 = vsub.s32 %v1064, %v1066
      %v1068 = vrot.slane %v1061, %v1067
      %v1070 = vlaneseq
      %vm1071 = vcmp.ge.s32.totalorder %v1070, 0
      %vm1072 = vcmp.lt.s32.totalorder %v1070, 512
      %vm1073 = vmand %vm1071, %vm1072
      %1074 = vst.msk [vmem:[%s331] sm:$0xf] %vm1073, %v1068
      %s1075 = smul.u32 4, %s22
      %p1076 = scmp.lt.s32.totalorder %s1075, 7
      %s1077 = scalar_select %p1076, %s1075, 7
      %s1078 = scalar_lea.vmem %s9, %s1077
      // Predicated region
      $region57: #{dnn_forward.1} parent=55 // pred_check
        %p1079 = pneg %p234
      $region58: #{dnn_forward.1} parent=55 // pred_check_branch
        %1081 = sbr.rel (%p1079) target = $region60
      $region59: #{dnn_forward.1} parent=55 // pred_region
        %s1082 = smul.u32 4, %s22
      $region60: #{dnn_forward.1} parent=55 // pred_fallthru
        _
    $region56: #{dnn_forward.1} parent=5 // pred_fallthru
      _
    %p1083 = scmp.le.s32.totalorder 2, %s17
    // Predicated region
    $region61: #{dnn_forward.1} parent=5 // pred_check
      %p1084 = pneg %p1083
    $region62: #{dnn_forward.1} parent=5 // pred_check_branch
      %1086 = sbr.rel (%p1084) target = $region64
    $region63: #{dnn_forward.1} parent=5 // pred_region
      %s1087 = ssub.s32 %s17, 2
      // Predicated region
      $region65: #{dnn_forward.1} parent=63 // pred_check
        %p1088 = pneg %p240
      $region66: #{dnn_forward.1} parent=63 // pred_check_branch
        %1090 = sbr.rel (%p1088) target = $region68
      $region67: #{dnn_forward.1} parent=63 // pred_region
        %s1091 = smul.u32 4, %s23
        %p1092 = scmp.lt.s32.totalorder %s1091, 7
        %s1093 = scalar_select %p1092, %s1091, 7
        %s1094 = scalar_lea.vmem %s9, %s1093
      $region68: #{dnn_forward.1} parent=63 // pred_fallthru
        _
    $region64: #{dnn_forward.1} parent=5 // pred_fallthru
      _
  $region6: #{dnn_forward.1} parent=0 // loop_footer
    %s21 = sadd.s32 1, %s17
  $region7: #{dnn_forward.1} parent=0 // loop_footer_branch
    %16 = sbr.rel target = $region3
  $region8: #{dnn_forward.1} parent=0 // loop_exit
    _

</llo_original>
